<compile_context>
chip_gen: v6e
topology: v6e:2x2x1
jax: 0.10.0
libtpu: 0.0.40
codegen_flags: <defaults>
</compile_context>

<pallas_src>
import functools

import jax
import jax.numpy as jnp
from jax.experimental import pallas as pl
from jax.experimental.pallas import tpu as pltpu

LEAKY_SLOPE = 0.01   # PyTorch nn.LeakyReLU default negative_slope
_HIDDEN = 32
_LANE = 128


def _round_up(x, m):
    return ((x + m - 1) // m) * m


def _leaky_relu(x):
    return jnp.where(x > 0, x, LEAKY_SLOPE * x)


def _fc_q_kernel(x_ref, p_ref, out_ref, *, d_in, d_h, d_out, c2, c3, bias_row):
    """One batch tile of packed rows: x (TBp, d_in) -> q (TBp, d_out)."""
    x = x_ref[...]
    if x.dtype != jnp.float32:
        x = x.astype(jnp.float32)

    # Static, lane/sublane-aligned views into the packed parameter slab
    # (column blocks start at multiples of 128; bias row at a multiple of 8).
    w1 = p_ref[0:d_in, 0:d_h]
    b1 = p_ref[bias_row:bias_row + 1, 0:d_h]
    w2 = p_ref[0:d_h, c2:c2 + d_h]
    b2 = p_ref[bias_row:bias_row + 1, c2:c2 + d_h]
    w3 = p_ref[0:d_h, c3:c3 + d_out]
    b3 = p_ref[bias_row:bias_row + 1, c3:c3 + d_out]

    h1 = _leaky_relu(jnp.dot(x, w1, preferred_element_type=jnp.float32) + b1)
    h2 = _leaky_relu(jnp.dot(h1, w2, preferred_element_type=jnp.float32) + b2)
    q = jnp.dot(h2, w3, preferred_element_type=jnp.float32) + b3

    out_ref[...] = q.astype(out_ref.dtype)


def pack_params(params):
    """Build block-diagonal replicated weights + tiled biases in ONE f32 slab.

    Packing factor P = how many batch rows share one sublane row. Chosen so the
    first matmul's K dim is ~128 lanes while keeping W2big <= (512,512).
    """
    w1 = jnp.asarray(params["w1"], jnp.float32)
    b1 = jnp.asarray(params["b1"], jnp.float32).reshape(-1)
    w2 = jnp.asarray(params["w2"], jnp.float32)
    b2 = jnp.asarray(params["b2"], jnp.float32).reshape(-1)
    w3 = jnp.asarray(params["w3"], jnp.float32)
    b3 = jnp.asarray(params["b3"], jnp.float32).reshape(-1)

    state_dim, hidden = w1.shape
    num_actions = w3.shape[1]

    pack = max(1, _LANE // state_dim)            # rows packed per sublane row
    pack = min(pack, max(1, 512 // hidden))      # keep W2big <= 512x512 f32

    d_in, d_h, d_out = pack * state_dim, pack * hidden, pack * num_actions

    eye = jnp.eye(pack, dtype=jnp.float32)
    w1b = jnp.kron(eye, w1)                      # (d_in, d_h) block diagonal
    w2b = jnp.kron(eye, w2)                      # (d_h,  d_h)
    w3b = jnp.kron(eye, w3)                      # (d_h,  d_out)
    b1b = jnp.tile(b1, pack)
    b2b = jnp.tile(b2, pack)
    b3b = jnp.tile(b3, pack)

    c2 = _round_up(d_h, _LANE)                   # lane-aligned column blocks
    c3 = c2 + _round_up(d_h, _LANE)
    cols = c3 + _round_up(d_out, _LANE)
    bias_row = _round_up(max(d_in, d_h), 8)      # sublane-aligned bias row
    rows = bias_row + 8

    slab = jnp.zeros((rows, cols), jnp.float32)
    slab = slab.at[0:d_in, 0:d_h].set(w1b)
    slab = slab.at[bias_row, 0:d_h].set(b1b)
    slab = slab.at[0:d_h, c2:c2 + d_h].set(w2b)
    slab = slab.at[bias_row, c2:c2 + d_h].set(b2b)
    slab = slab.at[0:d_h, c3:c3 + d_out].set(w3b)
    slab = slab.at[bias_row, c3:c3 + d_out].set(b3b)

    meta = dict(state_dim=state_dim, hidden=hidden, num_actions=num_actions,
                pack=pack, d_in=d_in, d_h=d_h, d_out=d_out,
                c2=c2, c3=c3, bias_row=bias_row)
    return slab, meta


def make_fc_q(params, *, block_rows=8192):
    """Pack params once and return a jitted forward: state (B, state_dim) -> (B, num_actions) f32."""
    slab, meta = pack_params(params)
    pack = meta["pack"]
    state_dim = meta["state_dim"]
    num_actions = meta["num_actions"]
    d_in, d_h, d_out = meta["d_in"], meta["d_h"], meta["d_out"]
    slab_shape = slab.shape

    kernel = functools.partial(
        _fc_q_kernel, d_in=d_in, d_h=d_h, d_out=d_out,
        c2=meta["c2"], c3=meta["c3"], bias_row=meta["bias_row"])

    # Packed-row tile size: multiple of 8 sublanes, capped so the per-tile
    # working set (double-buffered x/out + h1/h2 intermediates) stays well
    # under every generation's scoped-VMEM default.
    bytes_per_row = 4 * (2 * d_in + 2 * d_h + 2 * d_out)
    cap = max(8, (4 * 1024 * 1024 // bytes_per_row) // 8 * 8)
    block_packed = max(8, min(_round_up(max(block_rows // pack, 1), 8), cap))

    @jax.jit
    def _forward(state, slab):
        B, sd = state.shape
        if sd != state_dim:
            raise ValueError(f"expected state_dim={state_dim}, got {sd}")

        # Only pad to a multiple of the pack factor (< P rows); the grid itself
        # is ragged-safe via pl.cdiv, so no padding to the tile size and no
        # full-array pad/slice passes in the common case (B % P == 0).
        Bp = _round_up(B, pack)
        x = state if Bp == B else jnp.pad(state, ((0, Bp - B), (0, 0)))
        G = Bp // pack
        xp = x.reshape(G, d_in)          # free row-major reshape: lane-dense rows

        if G <= 8:
            TBp = G                      # block == full dims, single grid step
        else:
            TBp = min(block_packed, _round_up(G, 8))
            if G >= 16:
                # Keep >= 2 grid steps so the "parallel" axis can shard across
                # both TensorCores on v7x (harmless on single-TC v5e/v6e).
                TBp = min(TBp, _round_up(pl.cdiv(G, 2), 8))

        grid = (pl.cdiv(G, TBp),)
        out = pl.pallas_call(
            kernel,
            out_shape=jax.ShapeDtypeStruct((G, d_out), jnp.float32),
            grid=grid,
            in_specs=[
                pl.BlockSpec((TBp, d_in), lambda i: (i, 0)),   # streamed rows
                pl.BlockSpec(slab_shape, lambda i: (0, 0)),    # resident weights
            ],
            out_specs=pl.BlockSpec((TBp, d_out), lambda i: (i, 0)),
            compiler_params=pltpu.CompilerParams(
                dimension_semantics=("parallel",)),
        )(xp, slab)

        q = out.reshape(Bp, num_actions)
        return q if Bp == B else q[:B]

    return lambda state: _forward(state, slab)


def init_params(key, state_dim, num_actions, hidden=_HIDDEN):
    """Deterministic synthetic init (PyTorch-Linear-like uniform fan-in scaling)."""
    ks = jax.random.split(key, 6)

    def lin(kw, kb, fan_in, fan_out):
        bound = 1.0 / jnp.sqrt(fan_in)
        # stored as (in, out) == W.T of the PyTorch (out, in) weight
        w = jax.random.uniform(kw, (fan_in, fan_out), jnp.float32, -bound, bound)
        b = jax.random.uniform(kb, (1, fan_out), jnp.float32, -bound, bound)
        return w, b

    w1, b1 = lin(ks[0], ks[1], state_dim, hidden)
    w2, b2 = lin(ks[2], ks[3], hidden, hidden)
    w3, b3 = lin(ks[4], ks[5], hidden, num_actions)
    return {"w1": w1, "b1": b1, "w2": w2, "b2": b2, "w3": w3, "b3": b3}


def fc_q_reference(state, p):
    h1 = _leaky_relu(state @ p["w1"] + p["b1"])
    h2 = _leaky_relu(h1 @ p["w2"] + p["b2"])
    return h2 @ p["w3"] + p["b3"]


if __name__ == "__main__":
    key = jax.random.PRNGKey(0)
    k_param, k_state = jax.random.split(key)

    batch, state_dim, num_actions = 8, 16, 4
    params = init_params(k_param, state_dim, num_actions)

    fwd = make_fc_q(params)                       # packs params once
    state = jax.random.normal(k_state, (batch, state_dim), jnp.float32)
    q = jax.block_until_ready(fwd(state))
    q_ref = fc_q_reference(state, params)
    assert q.shape == (batch, num_actions)
    assert jnp.allclose(q, q_ref, atol=1e-5, rtol=1e-5)

    # Multi-tile grid + ragged tail: B=273 (not a multiple of pack=8 nor of the
    # tile); small block_rows forces >= 2 grid steps with a partial last block.
    fwd_small = make_fc_q(params, block_rows=256)
    state2 = jax.random.normal(jax.random.PRNGKey(1), (273, state_dim), jnp.float32)
    q2 = jax.block_until_ready(fwd_small(state2))
    q2_ref = fc_q_reference(state2, params)
    assert q2.shape == (273, num_actions)
    assert jnp.allclose(q2, q2_ref, atol=1e-5, rtol=1e-5)

    print("KERNEL_OK")
</pallas_src>

<mosaic_0001>
module attributes {stable_mosaic.version = 11 : i64} {
  func.func @_fc_q_kernel(%arg0: i32, %arg1: memref<1x128xf32, #tpu.memory_space<vmem>>, %arg2: memref<264x640xf32, #tpu.memory_space<vmem>>, %arg3: memref<1x32xf32, #tpu.memory_space<vmem>>) attributes {dimension_semantics = [#tpu.dimension_semantics<parallel>], iteration_bounds = array<i64: 1>, scalar_prefetch = 0 : i64, scratch_operands = 0 : i64, tpu.core_type = #tpu.core_type<tc>, window_params = [{transform_indices = @transform_0, window_bounds = array<i64: 1, 128>}, {pipeline_mode = #tpu.pipeline_mode<synchronous>, transform_indices = @transform_1, window_bounds = array<i64: 264, 640>}, {transform_indices = @transform_2, window_bounds = array<i64: 1, 32>}]} {
    %c0 = arith.constant 0 : index
    %c0_0 = arith.constant 0 : index
    %0 = vector.load %arg1[%c0, %c0_0] : memref<1x128xf32, #tpu.memory_space<vmem>>, vector<1x128xf32>
    %c0_1 = arith.constant 0 : index
    %c0_2 = arith.constant 0 : index
    %1 = vector.load %arg2[%c0_1, %c0_2] : memref<264x640xf32, #tpu.memory_space<vmem>>, vector<128x256xf32>
    %c256 = arith.constant 256 : index
    %c0_3 = arith.constant 0 : index
    %2 = vector.load %arg2[%c256, %c0_3] : memref<264x640xf32, #tpu.memory_space<vmem>>, vector<1x256xf32>
    %c0_4 = arith.constant 0 : index
    %c256_5 = arith.constant 256 : index
    %3 = vector.load %arg2[%c0_4, %c256_5] : memref<264x640xf32, #tpu.memory_space<vmem>>, vector<256x256xf32>
    %c256_6 = arith.constant 256 : index
    %c256_7 = arith.constant 256 : index
    %4 = vector.load %arg2[%c256_6, %c256_7] : memref<264x640xf32, #tpu.memory_space<vmem>>, vector<1x256xf32>
    %c0_8 = arith.constant 0 : index
    %c512 = arith.constant 512 : index
    %5 = vector.load %arg2[%c0_8, %c512] : memref<264x640xf32, #tpu.memory_space<vmem>>, vector<256x32xf32>
    %c256_9 = arith.constant 256 : index
    %c512_10 = arith.constant 512 : index
    %6 = vector.load %arg2[%c256_9, %c512_10] : memref<264x640xf32, #tpu.memory_space<vmem>>, vector<1x32xf32>
    %cst = arith.constant dense<0.000000e+00> : vector<1x256xf32>
    %7 = tpu.matmul %0, %1, %cst {dimension_numbers = #tpu.dot_dimension_numbers<[1], [0], [0], [1], [0, 0, 1, 1], [], []>} : vector<1x128xf32>, vector<128x256xf32>, vector<1x256xf32> -> vector<1x256xf32>
    %8 = arith.addf %7, %2 : vector<1x256xf32>
    %cst_11 = arith.constant 0.000000e+00 : f32
    %9 = vector.broadcast %cst_11 : f32 to vector<1x256xf32>
    %10 = arith.cmpf ogt, %8, %9 : vector<1x256xf32>
    %cst_12 = arith.constant 0.00999999977 : f32
    %11 = vector.broadcast %cst_12 : f32 to vector<1x256xf32>
    %12 = arith.mulf %11, %8 : vector<1x256xf32>
    %13 = arith.select %10, %8, %12 : vector<1x256xi1>, vector<1x256xf32>
    %cst_13 = arith.constant dense<0.000000e+00> : vector<1x256xf32>
    %14 = tpu.matmul %13, %3, %cst_13 {dimension_numbers = #tpu.dot_dimension_numbers<[1], [0], [0], [1], [0, 0, 1, 1], [], []>} : vector<1x256xf32>, vector<256x256xf32>, vector<1x256xf32> -> vector<1x256xf32>
    %15 = arith.addf %14, %4 : vector<1x256xf32>
    %cst_14 = arith.constant 0.000000e+00 : f32
    %16 = vector.broadcast %cst_14 : f32 to vector<1x256xf32>
    %17 = arith.cmpf ogt, %15, %16 : vector<1x256xf32>
    %cst_15 = arith.constant 0.00999999977 : f32
    %18 = vector.broadcast %cst_15 : f32 to vector<1x256xf32>
    %19 = arith.mulf %18, %15 : vector<1x256xf32>
    %20 = arith.select %17, %15, %19 : vector<1x256xi1>, vector<1x256xf32>
    %cst_16 = arith.constant dense<0.000000e+00> : vector<1x32xf32>
    %21 = tpu.matmul %20, %5, %cst_16 {dimension_numbers = #tpu.dot_dimension_numbers<[1], [0], [0], [1], [0, 0, 1, 1], [], []>} : vector<1x256xf32>, vector<256x32xf32>, vector<1x32xf32> -> vector<1x32xf32>
    %22 = arith.addf %21, %6 : vector<1x32xf32>
    %c0_17 = arith.constant 0 : index
    %c0_18 = arith.constant 0 : index
    %23 = vector.load %arg3[%c0_17, %c0_18] : memref<1x32xf32, #tpu.memory_space<vmem>>, vector<1x32xf32>
    tpu.vector_store %arg3[%c0_17, %c0_18], %22 {strides = array<i32>} : memref<1x32xf32, #tpu.memory_space<vmem>>, vector<1x32xf32>,
    return
  }
  func.func @transform_0(%arg0: i32) -> (i32, i32) {
    %c0_i32 = arith.constant 0 : i32
    %c0_i32_0 = arith.constant 0 : i32
    return %arg0, %c0_i32 : i32, i32
  }
  func.func @transform_1(%arg0: i32) -> (i32, i32) {
    %c0_i32 = arith.constant 0 : i32
    %c0_i32_0 = arith.constant 0 : i32
    %c0_i32_1 = arith.constant 0 : i32
    return %c0_i32, %c0_i32_0 : i32, i32
  }
  func.func @transform_2(%arg0: i32) -> (i32, i32) {
    %c0_i32 = arith.constant 0 : i32
    %c0_i32_0 = arith.constant 0 : i32
    return %arg0, %c0_i32 : i32, i32
  }
}

</mosaic_0001>

<llo_original>
// kernel: _forward.1
$region0: #{_forward.1}
  #allocation0 [shape = 'u32[]', space=smem, size = 0x4, offset = 0x4, fixed_abs, tag = 'smem constant byte address 0x4 - core index']
  #allocation1 [shape = 'u32[144,128]{1,0:T(1,128)}', space=vmem, size = 0x12000, scoped, tag = 'internal scratch']
  %s0 = inlined_call_operand.vmem [shape: f32[1,128], index: 0, kind: input, shape index: {}]
  %s1 = inlined_call_operand.hbm [shape: f32[264,640], index: 1, kind: input, shape index: {}]
  %s2 = inlined_call_operand.vmem [shape: f32[1,32], index: 2, kind: output, shape index: {}]
  %s3 = sld [smem:[#allocation0]]
  $region22: #{_forward.1} parent=0
    _
  %s5 = ssub.s32 1, %s3
  %s6 = scalar_select 0, %s5, %s3
  $region1: #{_forward.1} parent=0
    #allocation2 [shape = 'u8[675840]{0}', space=vmem, size = 0xa5000, scoped, tag = 'input window, operand 1, single buffered']
    #allocation3 [shape = 's32[1]{0}', space=sflag, size = 0x4, scoped, tag = 'scoped memory for _forward.1']
    %7 = vsyncpa [#allocation3], 0
    // Predicated region
    $region2: #{_forward.1} parent=1 // pred_check
      _
    $region3: #{_forward.1} parent=1 // pred_check_branch
      %9 = sbr.rel (0) target = $region5
    $region4: #{_forward.1} parent=1 // pred_region
      _
    $region5: #{_forward.1} parent=1 // pred_fallthru
      _
    // Predicated region
    $region6: #{_forward.1} parent=1 // pred_check
      _
    $region7: #{_forward.1} parent=1 // pred_check_branch
      %11 = sbr.rel (0) target = $region9
    $region8: #{_forward.1} parent=1 // pred_region
      %s13 = ssub.s32 21120, 21120
      %14 = vsyncadd [#allocation3], %s13
      %s15 = sshll.u32 [#allocation2], 4
      %s16 = int_to_ptr.vmem [resolvable:$true] %s15
      %21 = dma.hbm_to_vmem [thread:$0]  %s1, 21120, %s16, [#allocation3], 640, 640, 40
    $region9: #{_forward.1} parent=1 // pred_fallthru
      _
    // Predicated region
    $region10: #{_forward.1} parent=1 // pred_check
      _
    $region11: #{_forward.1} parent=1 // pred_check_branch
      %23 = sbr.rel (0) target = $region13
    $region12: #{_forward.1} parent=1 // pred_region
      %24 = dma.done [#allocation3], 21120
    $region13: #{_forward.1} parent=1 // pred_fallthru
      _
    %v25 = vld [vmem:[%s0] sm:$0x1]
    %v26 = vld [vmem:[#allocation2] sm:$0xff]
    %v27 = vld [vmem:[#allocation2 + $0x8] sm:$0xff]
    %v28 = vld [vmem:[#allocation2 + $0x28] sm:$0xff]
    %v29 = vld [vmem:[#allocation2 + $0x30] sm:$0xff]
    %v30 = vld [vmem:[#allocation2 + $0x50] sm:$0xff]
    %v31 = vld [vmem:[#allocation2 + $0x58] sm:$0xff]
    %v32 = vld [vmem:[#allocation2 + $0x78] sm:$0xff]
    %v33 = vld [vmem:[#allocation2 + $0x80] sm:$0xff]
    %v34 = vld [vmem:[#allocation2 + $0xa0] sm:$0xff]
    %v35 = vld [vmem:[#allocation2 + $0xa8] sm:$0xff]
    %v36 = vld [vmem:[#allocation2 + $0xc8] sm:$0xff]
    %v37 = vld [vmem:[#allocation2 + $0xd0] sm:$0xff]
    %v38 = vld [vmem:[#allocation2 + $0xf0] sm:$0xff]
    %v39 = vld [vmem:[#allocation2 + $0xf8] sm:$0xff]
    %v40 = vld [vmem:[#allocation2 + $0x118] sm:$0xff]
    %v41 = vld [vmem:[#allocation2 + $0x120] sm:$0xff]
    %v42 = vld [vmem:[#allocation2 + $0x140] sm:$0xff]
    %v43 = vld [vmem:[#allocation2 + $0x148] sm:$0xff]
    %v44 = vld [vmem:[#allocation2 + $0x168] sm:$0xff]
    %v45 = vld [vmem:[#allocation2 + $0x170] sm:$0xff]
    %v46 = vld [vmem:[#allocation2 + $0x190] sm:$0xff]
    %v47 = vld [vmem:[#allocation2 + $0x198] sm:$0xff]
    %v48 = vld [vmem:[#allocation2 + $0x1b8] sm:$0xff]
    %v49 = vld [vmem:[#allocation2 + $0x1c0] sm:$0xff]
    %v50 = vld [vmem:[#allocation2 + $0x1e0] sm:$0xff]
    %v51 = vld [vmem:[#allocation2 + $0x1e8] sm:$0xff]
    %v52 = vld [vmem:[#allocation2 + $0x208] sm:$0xff]
    %v53 = vld [vmem:[#allocation2 + $0x210] sm:$0xff]
    %v54 = vld [vmem:[#allocation2 + $0x230] sm:$0xff]
    %v55 = vld [vmem:[#allocation2 + $0x238] sm:$0xff]
    %v56 = vld [vmem:[#allocation2 + $0x258] sm:$0xff]
    %v57 = vld [vmem:[#allocation2 + $0x260] sm:$0xff]
    %s58 = scalar_lea.vmem [#allocation2], 1280
    %v59 = vld [vmem:[%s58] ss:$8 sm:$0x3]
    %v60 = vld [vmem:[#allocation2 + $0x10] sm:$0xff]
    %v61 = vld [vmem:[#allocation2 + $0x18] sm:$0xff]
    %v62 = vld [vmem:[#allocation2 + $0x38] sm:$0xff]
    %v63 = vld [vmem:[#allocation2 + $0x40] sm:$0xff]
    %v64 = vld [vmem:[#allocation2 + $0x60] sm:$0xff]
    %v65 = vld [vmem:[#allocation2 + $0x68] sm:$0xff]
    %v66 = vld [vmem:[#allocation2 + $0x88] sm:$0xff]
    %v67 = vld [vmem:[#allocation2 + $0x90] sm:$0xff]
    %v68 = vld [vmem:[#allocation2 + $0xb0] sm:$0xff]
    %v69 = vld [vmem:[#allocation2 + $0xb8] sm:$0xff]
    %v70 = vld [vmem:[#allocation2 + $0xd8] sm:$0xff]
    %v71 = vld [vmem:[#allocation2 + $0xe0] sm:$0xff]
    %v72 = vld [vmem:[#allocation2 + $0x100] sm:$0xff]
    %v73 = vld [vmem:[#allocation2 + $0x108] sm:$0xff]
    %v74 = vld [vmem:[#allocation2 + $0x128] sm:$0xff]
    %v75 = vld [vmem:[#allocation2 + $0x130] sm:$0xff]
    %v76 = vld [vmem:[#allocation2 + $0x150] sm:$0xff]
    %v77 = vld [vmem:[#allocation2 + $0x158] sm:$0xff]
    %v78 = vld [vmem:[#allocation2 + $0x178] sm:$0xff]
    %v79 = vld [vmem:[#allocation2 + $0x180] sm:$0xff]
    %v80 = vld [vmem:[#allocation2 + $0x1a0] sm:$0xff]
    %v81 = vld [vmem:[#allocation2 + $0x1a8] sm:$0xff]
    %v82 = vld [vmem:[#allocation2 + $0x1c8] sm:$0xff]
    %v83 = vld [vmem:[#allocation2 + $0x1d0] sm:$0xff]
    %v84 = vld [vmem:[#allocation2 + $0x1f0] sm:$0xff]
    %v85 = vld [vmem:[#allocation2 + $0x1f8] sm:$0xff]
    %v86 = vld [vmem:[#allocation2 + $0x218] sm:$0xff]
    %v87 = vld [vmem:[#allocation2 + $0x220] sm:$0xff]
    %v88 = vld [vmem:[#allocation2 + $0x240] sm:$0xff]
    %v89 = vld [vmem:[#allocation2 + $0x248] sm:$0xff]
    %v90 = vld [vmem:[#allocation2 + $0x268] sm:$0xff]
    %v91 = vld [vmem:[#allocation2 + $0x270] sm:$0xff]
    %v92 = vld [vmem:[#allocation2 + $0x290] sm:$0xff]
    %v93 = vld [vmem:[#allocation2 + $0x298] sm:$0xff]
    %v94 = vld [vmem:[#allocation2 + $0x2b8] sm:$0xff]
    %v95 = vld [vmem:[#allocation2 + $0x2c0] sm:$0xff]
    %v96 = vld [vmem:[#allocation2 + $0x2e0] sm:$0xff]
    %v97 = vld [vmem:[#allocation2 + $0x2e8] sm:$0xff]
    %v98 = vld [vmem:[#allocation2 + $0x308] sm:$0xff]
    %v99 = vld [vmem:[#allocation2 + $0x310] sm:$0xff]
    %v100 = vld [vmem:[#allocation2 + $0x330] sm:$0xff]
    %v101 = vld [vmem:[#allocation2 + $0x338] sm:$0xff]
    %v102 = vld [vmem:[#allocation2 + $0x358] sm:$0xff]
    %v103 = vld [vmem:[#allocation2 + $0x360] sm:$0xff]
    %v104 = vld [vmem:[#allocation2 + $0x380] sm:$0xff]
    %v105 = vld [vmem:[#allocation2 + $0x388] sm:$0xff]
    %v106 = vld [vmem:[#allocation2 + $0x3a8] sm:$0xff]
    %v107 = vld [vmem:[#allocation2 + $0x3b0] sm:$0xff]
    %v108 = vld [vmem:[#allocation2 + $0x3d0] sm:$0xff]
    %v109 = vld [vmem:[#allocation2 + $0x3d8] sm:$0xff]
    %v110 = vld [vmem:[#allocation2 + $0x3f8] sm:$0xff]
    %v111 = vld [vmem:[#allocation2 + $0x400] sm:$0xff]
    %v112 = vld [vmem:[#allocation2 + $0x420] sm:$0xff]
    %v113 = vld [vmem:[#allocation2 + $0x428] sm:$0xff]
    %v114 = vld [vmem:[#allocation2 + $0x448] sm:$0xff]
    %v115 = vld [vmem:[#allocation2 + $0x450] sm:$0xff]
    %v116 = vld [vmem:[#allocation2 + $0x470] sm:$0xff]
    %v117 = vld [vmem:[#allocation2 + $0x478] sm:$0xff]
    %v118 = vld [vmem:[#allocation2 + $0x498] sm:$0xff]
    %v119 = vld [vmem:[#allocation2 + $0x4a0] sm:$0xff]
    %v120 = vld [vmem:[#allocation2 + $0x4c0] sm:$0xff]
    %v121 = vld [vmem:[#allocation2 + $0x4c8] sm:$0xff]
    %v122 = vld [vmem:[#allocation2 + $0x4e8] sm:$0xff]
    %v123 = vld [vmem:[#allocation2 + $0x4f0] sm:$0xff]
    %s124 = scalar_lea.vmem [#allocation2], 1296
    %v125 = vld [vmem:[%s124] ss:$8 sm:$0x3]
    %v126 = vld [vmem:[#allocation2 + $0x20] sm:$0xff]
    %v127 = vld [vmem:[#allocation2 + $0x48] sm:$0xff]
    %v128 = vld [vmem:[#allocation2 + $0x70] sm:$0xff]
    %v129 = vld [vmem:[#allocation2 + $0x98] sm:$0xff]
    %v130 = vld [vmem:[#allocation2 + $0xc0] sm:$0xff]
    %v131 = vld [vmem:[#allocation2 + $0xe8] sm:$0xff]
    %v132 = vld [vmem:[#allocation2 + $0x110] sm:$0xff]
    %v133 = vld [vmem:[#allocation2 + $0x138] sm:$0xff]
    %v134 = vld [vmem:[#allocation2 + $0x160] sm:$0xff]
    %v135 = vld [vmem:[#allocation2 + $0x188] sm:$0xff]
    %v136 = vld [vmem:[#allocation2 + $0x1b0] sm:$0xff]
    %v137 = vld [vmem:[#allocation2 + $0x1d8] sm:$0xff]
    %v138 = vld [vmem:[#allocation2 + $0x200] sm:$0xff]
    %v139 = vld [vmem:[#allocation2 + $0x228] sm:$0xff]
    %v140 = vld [vmem:[#allocation2 + $0x250] sm:$0xff]
    %v141 = vld [vmem:[#allocation2 + $0x278] sm:$0xff]
    %v142 = vld [vmem:[#allocation2 + $0x2a0] sm:$0xff]
    %v143 = vld [vmem:[#allocation2 + $0x2c8] sm:$0xff]
    %v144 = vld [vmem:[#allocation2 + $0x2f0] sm:$0xff]
    %v145 = vld [vmem:[#allocation2 + $0x318] sm:$0xff]
    %v146 = vld [vmem:[#allocation2 + $0x340] sm:$0xff]
    %v147 = vld [vmem:[#allocation2 + $0x368] sm:$0xff]
    %v148 = vld [vmem:[#allocation2 + $0x390] sm:$0xff]
    %v149 = vld [vmem:[#allocation2 + $0x3b8] sm:$0xff]
    %v150 = vld [vmem:[#allocation2 + $0x3e0] sm:$0xff]
    %v151 = vld [vmem:[#allocation2 + $0x408] sm:$0xff]
    %v152 = vld [vmem:[#allocation2 + $0x430] sm:$0xff]
    %v153 = vld [vmem:[#allocation2 + $0x458] sm:$0xff]
    %v154 = vld [vmem:[#allocation2 + $0x480] sm:$0xff]
    %v155 = vld [vmem:[#allocation2 + $0x4a8] sm:$0xff]
    %v156 = vld [vmem:[#allocation2 + $0x4d0] sm:$0xff]
    %v157 = vld [vmem:[#allocation2 + $0x4f8] sm:$0xff]
    %v158 = vld [vmem:[#allocation2 + $0x520] ss:$0 sm:$0xff]
    %v160 = vlaneseq
    %v161 = vshrl.u32 %v160, 7
    %v162 = vsub.s32 0, %v161
    %v163 = vrot.slane %v59, %v162
    %v164 = vlaneseq
    %v165 = vshrl.u32 %v164, 7
    %v166 = vsub.s32 1, %v165
    %v167 = vrot.slane %v59, %v166
    %170 = vmatprep.subr.mxu0 %v57
    %171 = vmatpush1.msra.mxu0 %v56
    %172 = vmatprep.subr.mxu0 %v55
    %173 = vmatpush1.msra.mxu0 %v54
    %174 = vmatprep.subr.mxu0 %v53
    %175 = vmatpush1.msra.mxu0 %v52
    %176 = vmatprep.subr.mxu0 %v51
    %177 = vmatpush1.msra.mxu0 %v50
    %178 = vmatprep.subr.mxu0 %v49
    %179 = vmatpush1.msra.mxu0 %v48
    %180 = vmatprep.subr.mxu0 %v47
    %181 = vmatpush1.msra.mxu0 %v46
    %182 = vmatprep.subr.mxu0 %v45
    %183 = vmatpush1.msra.mxu0 %v44
    %184 = vmatprep.subr.mxu0 %v43
    %185 = vmatpush1.msra.mxu0 %v42
    %186 = vmatprep.subr.mxu0 %v41
    %187 = vmatpush1.msra.mxu0 %v40
    %188 = vmatprep.subr.mxu0 %v39
    %189 = vmatpush1.msra.mxu0 %v38
    %190 = vmatprep.subr.mxu0 %v37
    %191 = vmatpush1.msra.mxu0 %v36
    %192 = vmatprep.subr.mxu0 %v35
    %193 = vmatpush1.msra.mxu0 %v34
    %194 = vmatprep.subr.mxu0 %v33
    %195 = vmatpush1.msra.mxu0 %v32
    %196 = vmatprep.subr.mxu0 %v31
    %197 = vmatpush1.msra.mxu0 %v30
    %198 = vmatprep.subr.mxu0 %v29
    %199 = vmatpush1.msra.mxu0 %v28
    %200 = vmatprep.subr.mxu0 %v27
    %201 = vmatpush1.msra.mxu0 %v26
    %202 = vmatprep.subr.mxu0 0.0
    %203 = vmatpush2.msra.mxu0 0.0
    %204 = vmatprep.subr.mxu0 0.0
    %205 = vmatpush2.msra.mxu0 0.0
    %206 = vmatprep.subr.mxu0 0.0
    %207 = vmatpush2.msra.mxu0 0.0
    %208 = vmatprep.subr.mxu0 0.0
    %209 = vmatpush2.msra.mxu0 0.0
    %210 = vmatprep.subr.mxu0 0.0
    %211 = vmatpush2.msra.mxu0 0.0
    %212 = vmatprep.subr.mxu0 0.0
    %213 = vmatpush2.msra.mxu0 0.0
    %214 = vmatprep.subr.mxu0 0.0
    %215 = vmatpush2.msra.mxu0 0.0
    %216 = vmatprep.subr.mxu0 0.0
    %217 = vmatpush2.msra.mxu0 0.0
    %218 = vmatprep.subr.mxu0 0.0
    %219 = vmatpush2.msra.mxu0 0.0
    %220 = vmatprep.subr.mxu0 0.0
    %221 = vmatpush2.msra.mxu0 0.0
    %222 = vmatprep.subr.mxu0 0.0
    %223 = vmatpush2.msra.mxu0 0.0
    %224 = vmatprep.subr.mxu0 0.0
    %225 = vmatpush2.msra.mxu0 0.0
    %226 = vmatprep.subr.mxu0 0.0
    %227 = vmatpush2.msra.mxu0 0.0
    %228 = vmatprep.subr.mxu0 0.0
    %229 = vmatpush2.msra.mxu0 0.0
    %230 = vmatprep.subr.mxu0 0.0
    %231 = vmatpush2.msra.mxu0 0.0
    %232 = vmatprep.subr.mxu0 0.0
    %233 = vmatpush2.msra.mxu0 0.0
    %234 = vmatprep.mubr.f32.mxu0 0.0
    %235 = vmatmul.mubr.f32.gmra.mxu0 %v25
    %v236 = vpop.f32.mrf.mxu0
    %v237 = vadd.f32 %v163, %v236
    %v238 = vpop.f32.mrf.mxu0
    %v239 = vadd.f32 %v167, %v238
    %240 = vdwg.mxu0
    %vm241 = vcmp.gt.f32.partialorder %v237, 0.0
    %vm242 = vcmp.gt.f32.partialorder %v239, 0.0
    %v243 = vmul.f32 %v237, 0.01
    %v244 = vmul.f32 %v239, 0.01
    %v245 = vsel %vm241, %v237, %v243
    %v246 = vsel %vm242, %v239, %v244
    %v248 = vlaneseq
    %v249 = vshrl.u32 %v248, 7
    %v250 = vsub.s32 0, %v249
    %v251 = vrot.slane %v125, %v250
    %v252 = vlaneseq
    %v253 = vshrl.u32 %v252, 7
    %v254 = vsub.s32 1, %v253
    %v255 = vrot.slane %v125, %v254
    %258 = vmatprep.subr.mxu0 %v91
    %259 = vmatpush1.msra.mxu0 %v90
    %260 = vmatprep.subr.mxu0 %v89
    %261 = vmatpush1.msra.mxu0 %v88
    %262 = vmatprep.subr.mxu0 %v87
    %263 = vmatpush1.msra.mxu0 %v86
    %264 = vmatprep.subr.mxu0 %v85
    %265 = vmatpush1.msra.mxu0 %v84
    %266 = vmatprep.subr.mxu0 %v83
    %267 = vmatpush1.msra.mxu0 %v82
    %268 = vmatprep.subr.mxu0 %v81
    %269 = vmatpush1.msra.mxu0 %v80
    %270 = vmatprep.subr.mxu0 %v79
    %271 = vmatpush1.msra.mxu0 %v78
    %272 = vmatprep.subr.mxu0 %v77
    %273 = vmatpush1.msra.mxu0 %v76
    %274 = vmatprep.subr.mxu0 %v75
    %275 = vmatpush1.msra.mxu0 %v74
    %276 = vmatprep.subr.mxu0 %v73
    %277 = vmatpush1.msra.mxu0 %v72
    %278 = vmatprep.subr.mxu0 %v71
    %279 = vmatpush1.msra.mxu0 %v70
    %280 = vmatprep.subr.mxu0 %v69
    %281 = vmatpush1.msra.mxu0 %v68
    %282 = vmatprep.subr.mxu0 %v67
    %283 = vmatpush1.msra.mxu0 %v66
    %284 = vmatprep.subr.mxu0 %v65
    %285 = vmatpush1.msra.mxu0 %v64
    %286 = vmatprep.subr.mxu0 %v63
    %287 = vmatpush1.msra.mxu0 %v62
    %288 = vmatprep.subr.mxu0 %v61
    %289 = vmatpush1.msra.mxu0 %v60
    %290 = vmatprep.subr.mxu0 %v123
    %291 = vmatpush2.msra.mxu0 %v122
    %292 = vmatprep.subr.mxu0 %v121
    %293 = vmatpush2.msra.mxu0 %v120
    %294 = vmatprep.subr.mxu0 %v119
    %295 = vmatpush2.msra.mxu0 %v118
    %296 = vmatprep.subr.mxu0 %v117
    %297 = vmatpush2.msra.mxu0 %v116
    %298 = vmatprep.subr.mxu0 %v115
    %299 = vmatpush2.msra.mxu0 %v114
    %300 = vmatprep.subr.mxu0 %v113
    %301 = vmatpush2.msra.mxu0 %v112
    %302 = vmatprep.subr.mxu0 %v111
    %303 = vmatpush2.msra.mxu0 %v110
    %304 = vmatprep.subr.mxu0 %v109
    %305 = vmatpush2.msra.mxu0 %v108
    %306 = vmatprep.subr.mxu0 %v107
    %307 = vmatpush2.msra.mxu0 %v106
    %308 = vmatprep.subr.mxu0 %v105
    %309 = vmatpush2.msra.mxu0 %v104
    %310 = vmatprep.subr.mxu0 %v103
    %311 = vmatpush2.msra.mxu0 %v102
    %312 = vmatprep.subr.mxu0 %v101
    %313 = vmatpush2.msra.mxu0 %v100
    %314 = vmatprep.subr.mxu0 %v99
    %315 = vmatpush2.msra.mxu0 %v98
    %316 = vmatprep.subr.mxu0 %v97
    %317 = vmatpush2.msra.mxu0 %v96
    %318 = vmatprep.subr.mxu0 %v95
    %319 = vmatpush2.msra.mxu0 %v94
    %320 = vmatprep.subr.mxu0 %v93
    %321 = vmatpush2.msra.mxu0 %v92
    %322 = vmatprep.mubr.f32.mxu0 %v246
    %323 = vmatmul.mubr.f32.gmra.mxu0 %v245
    %v324 = vpop.f32.mrf.mxu0
    %v325 = vadd.f32 %v251, %v324
    %v326 = vpop.f32.mrf.mxu0
    %v327 = vadd.f32 %v255, %v326
    %328 = vdwg.mxu0
    %vm329 = vcmp.gt.f32.partialorder %v325, 0.0
    %vm330 = vcmp.gt.f32.partialorder %v327, 0.0
    %v331 = vmul.f32 %v325, 0.01
    %v332 = vmul.f32 %v327, 0.01
    %v333 = vsel %vm329, %v325, %v331
    %v334 = vsel %vm330, %v327, %v332
    %335 = vmatprep.subr.mxu0 0.0
    %336 = vmatpush1.msra.mxu0 %v141
    %337 = vmatprep.subr.mxu0 0.0
    %338 = vmatpush1.msra.mxu0 %v140
    %339 = vmatprep.subr.mxu0 0.0
    %340 = vmatpush1.msra.mxu0 %v139
    %341 = vmatprep.subr.mxu0 0.0
    %342 = vmatpush1.msra.mxu0 %v138
    %343 = vmatprep.subr.mxu0 0.0
    %344 = vmatpush1.msra.mxu0 %v137
    %345 = vmatprep.subr.mxu0 0.0
    %346 = vmatpush1.msra.mxu0 %v136
    %347 = vmatprep.subr.mxu0 0.0
    %348 = vmatpush1.msra.mxu0 %v135
    %349 = vmatprep.subr.mxu0 0.0
    %350 = vmatpush1.msra.mxu0 %v134
    %351 = vmatprep.subr.mxu0 0.0
    %352 = vmatpush1.msra.mxu0 %v133
    %353 = vmatprep.subr.mxu0 0.0
    %354 = vmatpush1.msra.mxu0 %v132
    %355 = vmatprep.subr.mxu0 0.0
    %356 = vmatpush1.msra.mxu0 %v131
    %357 = vmatprep.subr.mxu0 0.0
    %358 = vmatpush1.msra.mxu0 %v130
    %359 = vmatprep.subr.mxu0 0.0
    %360 = vmatpush1.msra.mxu0 %v129
    %361 = vmatprep.subr.mxu0 0.0
    %362 = vmatpush1.msra.mxu0 %v128
    %363 = vmatprep.subr.mxu0 0.0
    %364 = vmatpush1.msra.mxu0 %v127
    %365 = vmatprep.subr.mxu0 0.0
    %366 = vmatpush1.msra.mxu0 %v126
    %367 = vmatprep.subr.mxu0 0.0
    %368 = vmatpush2.msra.mxu0 %v157
    %369 = vmatprep.subr.mxu0 0.0
    %370 = vmatpush2.msra.mxu0 %v156
    %371 = vmatprep.subr.mxu0 0.0
    %372 = vmatpush2.msra.mxu0 %v155
    %373 = vmatprep.subr.mxu0 0.0
    %374 = vmatpush2.msra.mxu0 %v154
    %375 = vmatprep.subr.mxu0 0.0
    %376 = vmatpush2.msra.mxu0 %v153
    %377 = vmatprep.subr.mxu0 0.0
    %378 = vmatpush2.msra.mxu0 %v152
    %379 = vmatprep.subr.mxu0 0.0
    %380 = vmatpush2.msra.mxu0 %v151
    %381 = vmatprep.subr.mxu0 0.0
    %382 = vmatpush2.msra.mxu0 %v150
    %383 = vmatprep.subr.mxu0 0.0
    %384 = vmatpush2.msra.mxu0 %v149
    %385 = vmatprep.subr.mxu0 0.0
    %386 = vmatpush2.msra.mxu0 %v148
    %387 = vmatprep.subr.mxu0 0.0
    %388 = vmatpush2.msra.mxu0 %v147
    %389 = vmatprep.subr.mxu0 0.0
    %390 = vmatpush2.msra.mxu0 %v146
    %391 = vmatprep.subr.mxu0 0.0
    %392 = vmatpush2.msra.mxu0 %v145
    %393 = vmatprep.subr.mxu0 0.0
    %394 = vmatpush2.msra.mxu0 %v144
    %395 = vmatprep.subr.mxu0 0.0
    %396 = vmatpush2.msra.mxu0 %v143
    %397 = vmatprep.subr.mxu0 0.0
    %398 = vmatpush2.msra.mxu0 %v142
    %399 = vmatprep.mubr.f32.mxu0 %v334
    %400 = vmatmul.mubr.f32.gmra.mxu0 %v333
    %v401 = vpop.f32.mrf.mxu0
    %v402 = vadd.f32 %v158, %v401
    %v403 = vpop.f32.mrf.mxu0
    %404 = vdwg.mxu0
    %vm405 = vcmask 253952
    %406 = vst.msk [vmem:[%s2] sm:$0x1] %vm405, %v402
    // Predicated region
    $region14: #{_forward.1} parent=1 // pred_check
      _
    $region15: #{_forward.1} parent=1 // pred_check_branch
      %408 = sbr.rel (0) target = $region17
    $region16: #{_forward.1} parent=1 // pred_region
      _
    $region17: #{_forward.1} parent=1 // pred_fallthru
      _
    // Predicated region
    $region18: #{_forward.1} parent=1 // pred_check
      _
    $region19: #{_forward.1} parent=1 // pred_check_branch
      %410 = sbr.rel (0) target = $region21
    $region20: #{_forward.1} parent=1 // pred_region
      _
    $region21: #{_forward.1} parent=1 // pred_fallthru
      _
    %411 = vsyncpa [#allocation3], 1

</llo_original>
